<compile_context>
chip_gen: v6e
topology: v6e:2x2x1
jax: 0.10.0
libtpu: 0.0.40
codegen_flags: <defaults>
</compile_context>

<pallas_src>
import math

import jax
import jax.numpy as jnp
import numpy as np
from jax import lax
from jax.experimental import pallas as pl
from jax.experimental.pallas import tpu as pltpu

_VMEM_BLOCK_BUDGET = 16 * 1024 * 1024   # bytes for double-buffered in+out blocks
_VMEM_LIMIT = 32 * 1024 * 1024          # safe on v5e/v6e (128 MiB) and v7x (64 MiB)


def _round_up(v, m):
    return ((v + m - 1) // m) * m


def _choose_c_block(c, n_batch, fits, align_step=1):
    """Largest divisor of `c` that fits the VMEM budget, respects the TPU
    block-alignment step and (when possible) leaves >= 2 grid steps so both
    v7x TensorCores get work."""
    candidates = [d for d in range(1, c + 1)
                  if c % d == 0 and (d % align_step == 0 or d == c)]
    candidates.sort(reverse=True)
    usable = [d for d in candidates if fits(d)] or [candidates[-1]]
    multi = [d for d in usable if n_batch * (c // d) >= 2]
    return (multi or usable)[0]


# ---------------------- fast path: integer H scale factor ----------------------


def _nearest_fused_kernel(rw2_ref, x_ref, o_ref):
    # x_ref : (1, C_BLK*H_in, W_in)        rw2_ref : (W_in, s_h*W_out)
    # o_ref : (1, C_BLK*H_in, s_h*W_out)
    x = x_ref[0]
    y = jnp.dot(x, rw2_ref[...], preferred_element_type=jnp.float32)
    o_ref[0] = y.astype(o_ref.dtype)


def _upsample_fused(x, h_out, w_out, compute_dtype):
    n, c, h_in, w_in = x.shape
    s_h = h_out // h_in
    nw = s_h * w_out
    itemsize = jnp.dtype(compute_dtype).itemsize

    # 0/1 selection matrix.  Column block r (width W_out) equals rw, so
    # Y = X @ rw2 is the output block already laid out as (..., H_out, W_out).
    w_src = (np.arange(w_out) * w_in) // w_out
    rw = (np.arange(w_in)[:, None] == w_src[None, :]).astype(np.float32)
    rw2 = jnp.asarray(np.tile(rw, (1, s_h))).astype(compute_dtype)

    def fits(c_blk):
        rows = _round_up(c_blk * h_in, 8)
        per_copy = rows * (_round_up(w_in, 128) + _round_up(nw, 128)) * max(itemsize, 4)
        return 2 * per_copy <= _VMEM_BLOCK_BUDGET          # x2: double buffering

    align = 8 // math.gcd(h_in, 8)          # keep (C_BLK*H_in) % 8 == 0
    c_blk = _choose_c_block(c, n, fits, align_step=align)

    xc = x.astype(compute_dtype).reshape(n, c * h_in, w_in)

    out = pl.pallas_call(
        _nearest_fused_kernel,
        out_shape=jax.ShapeDtypeStruct((n, c * h_in, nw), x.dtype),
        grid=(n, c // c_blk),
        in_specs=[
            pl.BlockSpec((w_in, nw), lambda i, j: (0, 0)),                  # VMEM-resident
            pl.BlockSpec((1, c_blk * h_in, w_in), lambda i, j: (i, j, 0)),
        ],
        out_specs=pl.BlockSpec((1, c_blk * h_in, nw), lambda i, j: (i, j, 0)),
        compiler_params=pltpu.CompilerParams(
            dimension_semantics=("parallel", "parallel"),
            vmem_limit_bytes=_VMEM_LIMIT),
    )(rw2, xc)
    return out.reshape(n, c, h_out, w_out)


# -------------------- general path: arbitrary output sizes ---------------------


def _nearest_general_kernel(rh_ref, rw_ref, x_ref, o_ref):
    # x_ref : (1, C_BLK, H_in, W_in)   rh_ref : (H_out, H_in)   rw_ref : (W_in, W_out)
    # o_ref : (1, C_BLK, H_out, W_out)
    x = x_ref[0]
    cb, h_in, w_in = x.shape
    # W replication: one tall-M selection matmul over all channels/rows of the block.
    xw = jnp.dot(x.reshape(cb * h_in, w_in), rw_ref[...],
                 preferred_element_type=jnp.float32)
    xw = xw.reshape(cb, h_in, -1).astype(rw_ref.dtype)     # exact: each value is 1.0*x
    # H replication: batched 0/1 selection matmul (no transpose / gather needed).
    rh_b = jnp.broadcast_to(rh_ref[...], (cb,) + tuple(rh_ref.shape))
    y = lax.dot_general(rh_b, xw, (((2,), (1,)), ((0,), (0,))),
                        preferred_element_type=jnp.float32)
    o_ref[0] = y.astype(o_ref.dtype)


def _upsample_general(x, h_out, w_out, compute_dtype):
    n, c, h_in, w_in = x.shape

    h_src = (np.arange(h_out) * h_in) // h_out
    w_src = (np.arange(w_out) * w_in) // w_out
    rh = jnp.asarray((h_src[:, None] == np.arange(h_in)[None, :])
                     .astype(np.float32)).astype(compute_dtype)
    rw = jnp.asarray((np.arange(w_in)[:, None] == w_src[None, :])
                     .astype(np.float32)).astype(compute_dtype)

    def fits(c_blk):
        per_copy = c_blk * 4 * (
            _round_up(h_in, 8) * _round_up(w_in, 128)        # x block
            + _round_up(h_out, 8) * _round_up(w_out, 128)    # out block
            + _round_up(h_out, 8) * _round_up(h_in, 128)     # broadcast rh
            + _round_up(h_in, 8) * _round_up(w_out, 128))    # xw intermediate
        return 2 * per_copy <= _VMEM_BLOCK_BUDGET

    c_blk = _choose_c_block(c, n, fits, align_step=1)
    xc = x.astype(compute_dtype)

    return pl.pallas_call(
        _nearest_general_kernel,
        out_shape=jax.ShapeDtypeStruct((n, c, h_out, w_out), x.dtype),
        grid=(n, c // c_blk),
        in_specs=[
            pl.BlockSpec((h_out, h_in), lambda i, j: (0, 0)),
            pl.BlockSpec((w_in, w_out), lambda i, j: (0, 0)),
            pl.BlockSpec((1, c_blk, h_in, w_in), lambda i, j: (i, j, 0, 0)),
        ],
        out_specs=pl.BlockSpec((1, c_blk, h_out, w_out), lambda i, j: (i, j, 0, 0)),
        compiler_params=pltpu.CompilerParams(
            dimension_semantics=("parallel", "parallel"),
            vmem_limit_bytes=_VMEM_LIMIT),
    )(rh, rw, xc)


# --------------------------------- wrapper -------------------------------------


def upsample(x, size=None, scale_factor=None, mode="nearest", align_corners=False):
    """JAX/Pallas equivalent of Upsample.forward (F.interpolate) for NCHW input.

    Only mode='nearest' (PyTorch's floor(dst*in/out) rule, i.e. NOT
    'nearest-exact') is implemented.  `align_corners` has no effect on nearest
    interpolation and is ignored.
    """
    if mode != "nearest":
        # TODO(synk): bilinear / trilinear interpolation modes not implemented here.
        raise NotImplementedError("only mode='nearest' is implemented")
    if x.ndim != 4:
        # TODO(synk): 5-D (NCDHW) nearest upsampling not implemented here.
        raise NotImplementedError("only 4-D NCHW inputs are supported")

    n, c, h_in, w_in = x.shape
    if size is not None:
        h_out, w_out = (size, size) if isinstance(size, int) else tuple(size)
    else:
        sf = scale_factor
        if not isinstance(sf, (tuple, list)):
            sf = (sf, sf)
        h_out = int(math.floor(h_in * sf[0]))   # PyTorch: floor(input_size * scale)
        w_out = int(math.floor(w_in * sf[1]))
    h_out, w_out = int(h_out), int(w_out)

    if x.dtype in (jnp.dtype(jnp.bfloat16), jnp.dtype(jnp.float32)):
        compute_dtype = x.dtype
    else:
        # TODO(synk): other dtypes route through an f32 selection matmul
        # (exact for integers only up to 2**24).
        compute_dtype = jnp.dtype(jnp.float32)

    if h_out % h_in == 0:
        return _upsample_fused(x, h_out, w_out, compute_dtype)
    return _upsample_general(x, h_out, w_out, compute_dtype)


if __name__ == "__main__":
    key = jax.random.PRNGKey(0)
    x = jax.random.normal(key, (2, 4, 16, 16), dtype=jnp.float32)

    # Upsample(scale_factor=2, mode='nearest') as used in generic_UNet decoders.
    y = jax.block_until_ready(upsample(x, scale_factor=2, mode="nearest"))
    ref = jnp.repeat(jnp.repeat(x, 2, axis=2), 2, axis=3)
    assert y.shape == (2, 4, 32, 32), y.shape
    assert bool(jnp.array_equal(y, ref)), "f32 scale=2 mismatch"

    # bf16 stays bf16 end-to-end and must remain bit exact.
    xb = x.astype(jnp.bfloat16)
    yb = jax.block_until_ready(upsample(xb, scale_factor=2, mode="nearest"))
    refb = jnp.repeat(jnp.repeat(xb, 2, axis=2), 2, axis=3)
    assert yb.dtype == jnp.bfloat16 and bool(jnp.array_equal(yb, refb)), "bf16 mismatch"

    # Explicit anisotropic output size (still integer multiples -> fast path).
    y2 = jax.block_until_ready(upsample(x, size=(32, 48), mode="nearest"))
    ref2 = jnp.repeat(jnp.repeat(x, 2, axis=2), 3, axis=3)
    assert y2.shape == (2, 4, 32, 48) and bool(jnp.array_equal(y2, ref2)), "size= mismatch"

    print("KERNEL_OK")
</pallas_src>

<mosaic_0001>
module attributes {stable_mosaic.version = 11 : i64} {
  func.func @_nearest_fused_kernel(%arg0: i32, %arg1: i32, %arg2: memref<16x64xf32, #tpu.memory_space<vmem>>, %arg3: memref<1x64x16xf32, #tpu.memory_space<vmem>>, %arg4: memref<1x64x64xf32, #tpu.memory_space<vmem>>) attributes {dimension_semantics = [#tpu.dimension_semantics<parallel>, #tpu.dimension_semantics<parallel>], iteration_bounds = array<i64: 2, 1>, scalar_prefetch = 0 : i64, scratch_operands = 0 : i64, tpu.core_type = #tpu.core_type<tc>, window_params = [{pipeline_mode = #tpu.pipeline_mode<synchronous>, transform_indices = @transform_0, window_bounds = array<i64: 16, 64>}, {transform_indices = @transform_1, window_bounds = array<i64: 1, 64, 16>}, {transform_indices = @transform_2, window_bounds = array<i64: 1, 64, 64>}]} {
    %c0 = arith.constant 0 : index
    %c0_0 = arith.constant 0 : index
    %c0_1 = arith.constant 0 : index
    %0 = vector.load %arg3[%c0, %c0_0, %c0_1] : memref<1x64x16xf32, #tpu.memory_space<vmem>>, vector<1x64x16xf32>
    %1 = vector.shape_cast %0 : vector<1x64x16xf32> to vector<64x16xf32>
    %c0_2 = arith.constant 0 : index
    %c0_3 = arith.constant 0 : index
    %2 = vector.load %arg2[%c0_2, %c0_3] : memref<16x64xf32, #tpu.memory_space<vmem>>, vector<16x64xf32>
    %cst = arith.constant dense<0.000000e+00> : vector<64x64xf32>
    %3 = tpu.matmul %1, %2, %cst {dimension_numbers = #tpu.dot_dimension_numbers<[1], [0], [0], [1], [0, 0, 1, 1], [], []>} : vector<64x16xf32>, vector<16x64xf32>, vector<64x64xf32> -> vector<64x64xf32>
    %c0_4 = arith.constant 0 : index
    %c0_5 = arith.constant 0 : index
    %c0_6 = arith.constant 0 : index
    %4 = vector.load %arg4[%c0_4, %c0_5, %c0_6] : memref<1x64x64xf32, #tpu.memory_space<vmem>>, vector<1x64x64xf32>
    %5 = vector.shape_cast %4 : vector<1x64x64xf32> to vector<64x64xf32>
    %6 = vector.shape_cast %3 : vector<64x64xf32> to vector<1x64x64xf32>
    tpu.vector_store %arg4[%c0_4, %c0_5, %c0_6], %6 {strides = array<i32>} : memref<1x64x64xf32, #tpu.memory_space<vmem>>, vector<1x64x64xf32>,
    return
  }
  func.func @transform_0(%arg0: i32, %arg1: i32) -> (i32, i32) {
    %c0_i32 = arith.constant 0 : i32
    %c0_i32_0 = arith.constant 0 : i32
    %c0_i32_1 = arith.constant 0 : i32
    return %c0_i32, %c0_i32_0 : i32, i32
  }
  func.func @transform_1(%arg0: i32, %arg1: i32) -> (i32, i32, i32) {
    %c0_i32 = arith.constant 0 : i32
    %c0_i32_0 = arith.constant 0 : i32
    return %arg0, %arg1, %c0_i32 : i32, i32, i32
  }
  func.func @transform_2(%arg0: i32, %arg1: i32) -> (i32, i32, i32) {
    %c0_i32 = arith.constant 0 : i32
    %c0_i32_0 = arith.constant 0 : i32
    return %arg0, %arg1, %c0_i32 : i32, i32, i32
  }
}

</mosaic_0001>

<llo_original>
// kernel: tpu_custom_call.1
$region0: #{tpu_custom_call.1}
  #allocation0 [shape = 'u32[]', space=smem, size = 0x4, offset = 0x4, fixed_abs, tag = 'smem constant byte address 0x4 - core index']
  #allocation1 [shape = 'u32[144,128]{1,0:T(1,128)}', space=vmem, size = 0x12000, scoped, tag = 'internal scratch']
  %s0 = inlined_call_operand.vmem [shape: f32[16,64], index: 0, kind: input, shape index: {}]
  %s1 = inlined_call_operand.vmem [shape: f32[2,64,16], index: 1, kind: input, shape index: {}]
  %s2 = inlined_call_operand.hbm [shape: f32[2,64,64], index: 2, kind: output, shape index: {}]
  %s3 = sld [smem:[#allocation0]]
  $region41: #{tpu_custom_call.1} parent=0
    _
  %s5 = ssub.s32 1, %s3
  %s6 = scalar_select 0, %s5, %s3
  $region1: #{tpu_custom_call.1} parent=0
    #allocation2 [shape = 'u8[65536]{0}', space=vmem, size = 0x10000, scoped, tag = 'output window, operand 0']
    #allocation3 [shape = 's32[2]{0}', space=sflag, size = 0x8, scoped, tag = 'scoped memory for tpu_custom_call.1']
    %7 = vsyncpa [#allocation3], 0
    %s8 = scalar_lea.sflag [#allocation3], 1
    %9 = vsyncpa %s8, 0
    loop: start=0, step=1, limit=4
    $region2: #{tpu_custom_call.1} parent=1 // loop_pre_header
      _
    $region3: #{tpu_custom_call.1} parent=1 // loop_header
      %s11 = sphi 0, %s15
      %p12 = scmp.ge.s32.totalorder %s11, 4
      %s18 = sphi 0, %s30
      %s19 = sphi 0, %s26
      %s20 = sphi 0, %s18
      %s21 = sphi 0, %s19
      %s22 = sphi 0, %s20
      %s23 = sphi 0, %s21
      %s31 = sphi 0, %s31
      %s33 = sphi 0, %s31
      %s34 = sphi 0, %s33
      %s48 = sphi 0, %s34
      %s56 = sphi 0, %s58
      %s59 = sphi 0, %s56
      %s60 = sphi 0, %s59
      %s76 = sphi 0, %s60
      %s84 = sphi 0, %s86
      %s87 = sphi 0, %s84
      %s88 = sphi 0, %s87
      %s104 = sphi 0, %s88
    $region4: #{tpu_custom_call.1} parent=1 // loop_header_branch
      %14 = sbr.rel (%p12) target = $region8
    $region5: #{tpu_custom_call.1} parent=1 // loop_body
      %s16 = ssub.s32 %s11, 1
      %s17 = ssub.s32 %s11, 2
      %s24 = sadd.s32 1, %s19
      %p25 = scmp.ge.s32.totalorder %s24, 1
      %s26 = scalar_select %p25, 0, %s24
      %s27 = sadd.s32 1, %s18
      %s28 = scalar_select %p25, %s27, %s18
      %p29 = scmp.ge.s32.totalorder %s28, 2
      %s30 = scalar_select %p29, 0, %s28
      %s32 = sadd.s32 %s31, 1
      %p35 = scmp.eq.s32.totalorder %s11, 1
      %p36 = scmp.ne.s32.totalorder %s31, %s33
      %p37 = scmp.eq.s32.totalorder %s11, 0
      %p38 = por %p36, %p37
      %p39 = scmp.ne.s32.totalorder %s31, %s33
      %p40 = scmp.eq.s32.totalorder %s16, 1
      %p41 = por %p39, %p40
      %p42 = scmp.ne.s32.totalorder %s33, %s34
      %p43 = scmp.eq.s32.totalorder %s16, 0
      %p44 = por %p42, %p43
      %p45 = scmp.ne.s32.totalorder %s33, %s34
      %p46 = scmp.eq.s32.totalorder %s17, 1
      %p47 = por %p45, %p46
      %p49 = scmp.ne.s32.totalorder %s34, %s48
      %p50 = scmp.eq.s32.totalorder %s17, 0
      %p51 = por %p49, %p50
      %s52 = ssub.s32 %s18, %s30
      %s53 = ssub.s32 %s19, %s26
      %s54 = sor.u32 %s52, %s53
      %p55 = scmp.eq.s32.totalorder %s54, 0
      %s57 = sadd.s32 %s56, 1
      %s58 = scalar_select %p55, %s56, %s57
      %p61 = pneg %p55
      %p62 = scmp.eq.s32.totalorder %s11, 1
      %p63 = por %p61, %p62
      %p64 = scmp.ne.s32.totalorder %s56, %s59
      %p65 = scmp.eq.s32.totalorder %s11, 0
      %p66 = por %p64, %p65
      %p67 = scmp.ne.s32.totalorder %s56, %s59
      %p68 = scmp.eq.s32.totalorder %s16, 1
      %p69 = por %p67, %p68
      %p70 = scmp.ne.s32.totalorder %s59, %s60
      %p71 = scmp.eq.s32.totalorder %s16, 0
      %p72 = por %p70, %p71
      %p73 = scmp.ne.s32.totalorder %s59, %s60
      %p74 = scmp.eq.s32.totalorder %s17, 1
      %p75 = por %p73, %p74
      %p77 = scmp.ne.s32.totalorder %s60, %s76
      %p78 = scmp.eq.s32.totalorder %s17, 0
      %p79 = por %p77, %p78
      %s80 = ssub.s32 %s18, %s30
      %s81 = ssub.s32 %s19, %s26
      %s82 = sor.u32 %s80, %s81
      %p83 = scmp.eq.s32.totalorder %s82, 0
      %s85 = sadd.s32 %s84, 1
      %s86 = scalar_select %p83, %s84, %s85
      %p89 = pneg %p83
      %p90 = scmp.eq.s32.totalorder %s11, 1
      %p91 = por %p89, %p90
      %p92 = scmp.ne.s32.totalorder %s84, %s87
      %p93 = scmp.eq.s32.totalorder %s11, 0
      %p94 = por %p92, %p93
      %p95 = scmp.ne.s32.totalorder %s84, %s87
      %p96 = scmp.eq.s32.totalorder %s16, 1
      %p97 = por %p95, %p96
      %p98 = scmp.ne.s32.totalorder %s87, %s88
      %p99 = scmp.eq.s32.totalorder %s16, 0
      %p100 = por %p98, %p99
      %p101 = scmp.ne.s32.totalorder %s87, %s88
      %p102 = scmp.eq.s32.totalorder %s17, 1
      %p103 = por %p101, %p102
      %p105 = scmp.ne.s32.totalorder %s88, %s104
      %p106 = scmp.eq.s32.totalorder %s17, 0
      %p107 = por %p105, %p106
      %p108 = scmp.le.s32.totalorder 1, %s11
      %p109 = scmp.lt.s32.totalorder %s11, 3
      %p110 = pnand %p108, %p109
      %p111 = pneg %p110
      // Predicated region
      $region9: #{tpu_custom_call.1} parent=5 // pred_check
        _
      $region10: #{tpu_custom_call.1} parent=5 // pred_check_branch
        %113 = sbr.rel (%p110) target = $region12
      $region11: #{tpu_custom_call.1} parent=5 // pred_region
        %s114 = ssub.s32 %s11, 1
        // Predicated region
        $region13: #{tpu_custom_call.1} parent=11 // pred_check
          %p115 = pneg %p44
        $region14: #{tpu_custom_call.1} parent=11 // pred_check_branch
          %117 = sbr.rel (%p115) target = $region16
        $region15: #{tpu_custom_call.1} parent=11 // pred_region
          _
        $region16: #{tpu_custom_call.1} parent=11 // pred_fallthru
          _
      $region12: #{tpu_custom_call.1} parent=5 // pred_fallthru
        _
      %p118 = scmp.lt.s32.totalorder %s11, 2
      // Predicated region
      $region17: #{tpu_custom_call.1} parent=5 // pred_check
        %p119 = pneg %p118
      $region18: #{tpu_custom_call.1} parent=5 // pred_check_branch
        %121 = sbr.rel (%p119) target = $region20
      $region19: #{tpu_custom_call.1} parent=5 // pred_region
        // Predicated region
        $region21: #{tpu_custom_call.1} parent=19 // pred_check
          %p122 = pneg %p66
        $region22: #{tpu_custom_call.1} parent=19 // pred_check_branch
          %124 = sbr.rel (%p122) target = $region24
        $region23: #{tpu_custom_call.1} parent=19 // pred_region
          %s125 = smul.u32 8, %s19
          %p126 = scmp.lt.s32.totalorder %s18, 1
          %s127 = scalar_select %p126, %s18, 1
          %p128 = scmp.lt.s32.totalorder %s125, 7
          %s129 = scalar_select %p128, %s125, 7
          %s130 = smul.addr %s127, 8
          %s131 = sadd.s32 %s129, %s130
          %s132 = smul.addr %s131, 8
          %s133 = scalar_lea.vmem %s1, %s132
          %s134 = smul.u32 8, %s19
        $region24: #{tpu_custom_call.1} parent=19 // pred_fallthru
          _
      $region20: #{tpu_custom_call.1} parent=5 // pred_fallthru
        _
      %p135 = scmp.le.s32.totalorder 1, %s11
      %p136 = scmp.lt.s32.totalorder %s11, 3
      %p137 = pnand %p135, %p136
      %p138 = pneg %p137
      // Predicated region
      $region25: #{tpu_custom_call.1} parent=5 // pred_check
        _
      $region26: #{tpu_custom_call.1} parent=5 // pred_check_branch
        %140 = sbr.rel (%p137) target = $region28
      $region27: #{tpu_custom_call.1} parent=5 // pred_region
        %s141 = ssub.s32 %s11, 1
        %p142 = pneg %p44
        %p143 = pneg %p41
        %s144 = smul.u32 8, %s21
        %p145 = scmp.lt.s32.totalorder %s20, 1
        %s146 = scalar_select %p145, %s20, 1
        %p147 = scmp.lt.s32.totalorder %s144, 7
        %s148 = scalar_select %p147, %s144, 7
        %s149 = smul.addr %s146, 8
        %s150 = sadd.s32 %s148, %s149
        %s151 = smul.addr %s150, 8
        %s152 = scalar_lea.vmem %s1, %s151
        %p153 = pneg %p72
        %p154 = pneg %p69
        %p155 = pneg %p100
        %p156 = pneg %p97
        %s157 = sand.u32 %s87, 1
        %s158 = scalar_lea.sflag [#allocation3], %s157
        %s159 = sand.u32 %s87, 1
        %s160 = smul.addr %s159, 64
        %s161 = scalar_lea.vmem [#allocation2], %s160
        %s162 = smul.u32 8, %s21
        %p163 = scmp.lt.s32.totalorder %s20, 1
        %s164 = scalar_select %p163, %s20, 1
        %p165 = scmp.lt.s32.totalorder %s162, 7
        %s166 = scalar_select %p165, %s162, 7
        %s167 = smul.addr %s164, 8
        %s168 = sadd.s32 %s166, %s167
        %s169 = smul.addr %s168, 8
        %s170 = scalar_lea.vmem %s1, %s169
        %s171 = smul.u32 8, %s21
        %s172 = smul.u32 8, %s21
        %v173 = vld [vmem:[%s170] sm:$0xff]
        %v174 = vld [vmem:[%s170 + $0x8] sm:$0xff]
        %v175 = vld [vmem:[%s170 + $0x10] sm:$0xff]
        %v176 = vld [vmem:[%s170 + $0x18] sm:$0xff]
        %v177 = vld [vmem:[%s170 + $0x20] sm:$0xff]
        %v178 = vld [vmem:[%s170 + $0x28] sm:$0xff]
        %v179 = vld [vmem:[%s170 + $0x30] sm:$0xff]
        %v180 = vld [vmem:[%s170 + $0x38] sm:$0xff]
        %v181 = vld [vmem:[%s0] sm:$0xff]
        %v182 = vld [vmem:[%s0 + $0x8] sm:$0xff]
        %vm183 = vcmask 130048
        %v185 = vsel %vm183, %v173, 0
        %v188 = vsel %vm183, %v174, 0
        %v191 = vsel %vm183, %v175, 0
        %v194 = vsel %vm183, %v176, 0
        %v197 = vsel %vm183, %v177, 0
        %v200 = vsel %vm183, %v178, 0
        %v203 = vsel %vm183, %v179, 0
        %v206 = vsel %vm183, %v180, 0
        %208 = vmatprep.subr.mxu0 0.0
        %209 = vmatpush1.msra.mxu0 0.0
        %210 = vmatprep.subr.mxu0 0.0
        %211 = vmatpush1.msra.mxu0 0.0
        %212 = vmatprep.subr.mxu0 0.0
        %213 = vmatpush1.msra.mxu0 0.0
        %214 = vmatprep.subr.mxu0 0.0
        %215 = vmatpush1.msra.mxu0 0.0
        %216 = vmatprep.subr.mxu0 0.0
        %217 = vmatpush1.msra.mxu0 0.0
        %218 = vmatprep.subr.mxu0 0.0
        %219 = vmatpush1.msra.mxu0 0.0
        %220 = vmatprep.subr.mxu0 0.0
        %221 = vmatpush1.msra.mxu0 0.0
        %222 = vmatprep.subr.mxu0 0.0
        %223 = vmatpush1.msra.mxu0 0.0
        %224 = vmatprep.subr.mxu0 0.0
        %225 = vmatpush1.msra.mxu0 0.0
        %226 = vmatprep.subr.mxu0 0.0
        %227 = vmatpush1.msra.mxu0 0.0
        %228 = vmatprep.subr.mxu0 0.0
        %229 = vmatpush1.msra.mxu0 0.0
        %230 = vmatprep.subr.mxu0 0.0
        %231 = vmatpush1.msra.mxu0 0.0
        %232 = vmatprep.subr.mxu0 0.0
        %233 = vmatpush1.msra.mxu0 0.0
        %234 = vmatprep.subr.mxu0 0.0
        %235 = vmatpush1.msra.mxu0 0.0
        %236 = vmatprep.subr.mxu0 0.0
        %237 = vmatpush1.msra.mxu0 %v182
        %238 = vmatprep.subr.mxu0 0.0
        %239 = vmatpush1.msra.mxu0 %v181
        %240 = vmatprep.subr.mxu0 0.0
        %241 = vmatpush2.msra.mxu0 0.0
        %242 = vmatprep.subr.mxu0 0.0
        %243 = vmatpush2.msra.mxu0 0.0
        %244 = vmatprep.subr.mxu0 0.0
        %245 = vmatpush2.msra.mxu0 0.0
        %246 = vmatprep.subr.mxu0 0.0
        %247 = vmatpush2.msra.mxu0 0.0
        %248 = vmatprep.subr.mxu0 0.0
        %249 = vmatpush2.msra.mxu0 0.0
        %250 = vmatprep.subr.mxu0 0.0
        %251 = vmatpush2.msra.mxu0 0.0
        %252 = vmatprep.subr.mxu0 0.0
        %253 = vmatpush2.msra.mxu0 0.0
        %254 = vmatprep.subr.mxu0 0.0
        %255 = vmatpush2.msra.mxu0 0.0
        %256 = vmatprep.subr.mxu0 0.0
        %257 = vmatpush2.msra.mxu0 0.0
        %258 = vmatprep.subr.mxu0 0.0
        %259 = vmatpush2.msra.mxu0 0.0
        %260 = vmatprep.subr.mxu0 0.0
        %261 = vmatpush2.msra.mxu0 0.0
        %262 = vmatprep.subr.mxu0 0.0
        %263 = vmatpush2.msra.mxu0 0.0
        %264 = vmatprep.subr.mxu0 0.0
        %265 = vmatpush2.msra.mxu0 0.0
        %266 = vmatprep.subr.mxu0 0.0
        %267 = vmatpush2.msra.mxu0 0.0
        %268 = vmatprep.subr.mxu0 0.0
        %269 = vmatpush2.msra.mxu0 0.0
        %270 = vmatprep.subr.mxu0 0.0
        %271 = vmatpush2.msra.mxu0 0.0
        %272 = vmatprep.mubr.f32.mxu0 0.0
        %273 = vmatmul.mubr.f32.gmra.mxu0 %v185
        %v274 = vpop.f32.mrf.mxu0
        %v275 = vadd.f32 0.0, %v274
        %v276 = vpop.f32.mrf.mxu0
        %277 = vmatprep.mubr.f32.mxu0 0.0
        %278 = vmatmul.mubr.f32.gmra.mxu0 %v188
        %v279 = vpop.f32.mrf.mxu0
        %v280 = vadd.f32 0.0, %v279
        %v281 = vpop.f32.mrf.mxu0
        %282 = vmatprep.mubr.f32.mxu0 0.0
        %283 = vmatmul.mubr.f32.gmra.mxu0 %v191
        %v284 = vpop.f32.mrf.mxu0
        %v285 = vadd.f32 0.0, %v284
        %v286 = vpop.f32.mrf.mxu0
        %287 = vmatprep.mubr.f32.mxu0 0.0
        %288 = vmatmul.mubr.f32.gmra.mxu0 %v194
        %v289 = vpop.f32.mrf.mxu0
        %v290 = vadd.f32 0.0, %v289
        %v291 = vpop.f32.mrf.mxu0
        %292 = vmatprep.mubr.f32.mxu0 0.0
        %293 = vmatmul.mubr.f32.gmra.mxu0 %v197
        %v294 = vpop.f32.mrf.mxu0
        %v295 = vadd.f32 0.0, %v294
        %v296 = vpop.f32.mrf.mxu0
        %297 = vmatprep.mubr.f32.mxu0 0.0
        %298 = vmatmul.mubr.f32.gmra.mxu0 %v200
        %v299 = vpop.f32.mrf.mxu0
        %v300 = vadd.f32 0.0, %v299
        %v301 = vpop.f32.mrf.mxu0
        %302 = vmatprep.mubr.f32.mxu0 0.0
        %303 = vmatmul.mubr.f32.gmra.mxu0 %v203
        %v304 = vpop.f32.mrf.mxu0
        %v305 = vadd.f32 0.0, %v304
        %v306 = vpop.f32.mrf.mxu0
        %307 = vmatprep.mubr.f32.mxu0 0.0
        %308 = vmatmul.mubr.f32.gmra.mxu0 %v206
        %v309 = vpop.f32.mrf.mxu0
        %v310 = vadd.f32 0.0, %v309
        %v311 = vpop.f32.mrf.mxu0
        %312 = vdwg.mxu0
        %vm313 = vcmask 523264
        %314 = vst.msk [vmem:[%s161] sm:$0xff] %vm313, %v275
        %315 = vst.msk [vmem:[%s161 + $0x8] sm:$0xff] %vm313, %v280
        %316 = vst.msk [vmem:[%s161 + $0x10] sm:$0xff] %vm313, %v285
        %317 = vst.msk [vmem:[%s161 + $0x18] sm:$0xff] %vm313, %v290
        %318 = vst.msk [vmem:[%s161 + $0x20] sm:$0xff] %vm313, %v295
        %319 = vst.msk [vmem:[%s161 + $0x28] sm:$0xff] %vm313, %v300
        %320 = vst.msk [vmem:[%s161 + $0x30] sm:$0xff] %vm313, %v305
        %321 = vst.msk [vmem:[%s161 + $0x38] sm:$0xff] %vm313, %v310
        %s322 = sand.u32 %s87, 1
        %s323 = scalar_lea.sflag [#allocation3], %s322
        %s324 = sand.u32 %s87, 1
        %s325 = smul.addr %s324, 64
        %s326 = scalar_lea.vmem [#allocation2], %s325
        // Predicated region
        $region29: #{tpu_custom_call.1} parent=27 // pred_check
          %p327 = pneg %p97
        $region30: #{tpu_custom_call.1} parent=27 // pred_check_branch
          %329 = sbr.rel (%p327) target = $region32
        $region31: #{tpu_custom_call.1} parent=27 // pred_region
          %s330 = smul.u32 8, %s21
          %s332 = ssub.s32 1024, 1024
          %333 = vsyncadd %s323, %s332
          %s334 = smul.addr %s20, 8
          %s335 = sadd.s32 %s330, %s334
          %s336 = smul.addr %s335, 128
          %s337 = scalar_lea.hbm %s2, %s336
          %s338 = sshll.u32 %s326, 4
          %s339 = int_to_ptr.vmem [resolvable:$true] %s338
          %344 = dma.vmem_to_hbm [thread:$0]  %s339, 1024, %s337, %s323, 128, 128, 8
        $region32: #{tpu_custom_call.1} parent=27 // pred_fallthru
          _
      $region28: #{tpu_custom_call.1} parent=5 // pred_fallthru
        _
      %p345 = scmp.le.s32.totalorder 2, %s11
      // Predicated region
      $region33: #{tpu_custom_call.1} parent=5 // pred_check
        %p346 = pneg %p345
      $region34: #{tpu_custom_call.1} parent=5 // pred_check_branch
        %348 = sbr.rel (%p346) target = $region36
      $region35: #{tpu_custom_call.1} parent=5 // pred_region
        %s349 = ssub.s32 %s11, 2
        // Predicated region
        $region37: #{tpu_custom_call.1} parent=35 // pred_check
          %p350 = pneg %p103
        $region38: #{tpu_custom_call.1} parent=35 // pred_check_branch
          %352 = sbr.rel (%p350) target = $region40
        $region39: #{tpu_custom_call.1} parent=35 // pred_region
          %s353 = sand.u32 %s88, 1
          %s354 = scalar_lea.sflag [#allocation3], %s353
          %s355 = sand.u32 %s88, 1
          %s356 = smul.addr %s355, 64
          %s357 = scalar_lea.vmem [#allocation2], %s356
          %358 = dma.done %s354, 1024
        $region40: #{tpu_custom_call.1} parent=35 // pred_fallthru
          _
      $region36: #{tpu_custom_call.1} parent=5 // pred_fallthru
        _
    $region6: #{tpu_custom_call.1} parent=1 // loop_footer
      %s15 = sadd.s32 1, %s11
    $region7: #{tpu_custom_call.1} parent=1 // loop_footer_branch
      %10 = sbr.rel target = $region3
    $region8: #{tpu_custom_call.1} parent=1 // loop_exit
      _
    %359 = vsyncpa [#allocation3], 1
    %s360 = scalar_lea.sflag [#allocation3], 1
    %361 = vsyncpa %s360, 1

</llo_original>
